<compile_context>
chip_gen: v6e
topology: v6e:2x2x1
jax: 0.10.0
libtpu: 0.0.40
codegen_flags: <defaults>
</compile_context>

<pallas_src>
import jax
import jax.numpy as jnp
from jax.experimental import pallas as pl
from jax.experimental.pallas import tpu as pltpu


# ----------------------------------------------------------------------------
# Pallas kernel: fused dual conv-as-GEMM.
# For grid step (n, j) it computes, for BOTH convolutions,
#     out[n, :, j*TM:(j+1)*TM] = W @ colT[n, :, j*TM:(j+1)*TM] + b
# with bf16 operands and f32 accumulation on the MXU. Every load/store is
# lane-dense (last dim = spatial tile TM).
# ----------------------------------------------------------------------------
def _dual_conv_kernel(colx_ref, wx_ref, bx_ref, colc_ref, wc_ref, bc_ref,
                      ox_ref, oc_ref):
    ox_ref[0] = (
        jnp.dot(wx_ref[...], colx_ref[0], preferred_element_type=jnp.float32)
        + bx_ref[...]
    ).astype(ox_ref.dtype)
    oc_ref[0] = (
        jnp.dot(wc_ref[...], colc_ref[0], preferred_element_type=jnp.float32)
        + bc_ref[...]
    ).astype(oc_ref.dtype)


# ----------------------------------------------------------------------------
# Wrapper-side prep (pure data movement, no compute):
# stride-2 tap planes in the transposed (K, M) layout, cast to bf16 once.
# ----------------------------------------------------------------------------
def _tap_matrix(x_nchw, ksize=3, stride=2, pad=1, dtype=jnp.bfloat16):
    """(N, C, H, W) -> (N, 9*C, Ho*Wo) bf16 transposed patch matrix."""
    N, C, H, W = x_nchw.shape
    Ho = (H + 2 * pad - ksize) // stride + 1
    Wo = (W + 2 * pad - ksize) // stride + 1
    xp = jnp.pad(x_nchw.astype(dtype), ((0, 0), (0, 0), (pad, pad), (pad, pad)))
    taps = []
    for dh in range(ksize):
        for dw in range(ksize):
            taps.append(
                jax.lax.slice(
                    xp,
                    (0, 0, dh, dw),
                    (N, C, dh + stride * (Ho - 1) + 1, dw + stride * (Wo - 1) + 1),
                    (1, 1, stride, stride),
                )  # (N, C, Ho, Wo)
            )
    col = jnp.stack(taps, axis=1)                      # (N, 9, C, Ho, Wo)
    col = col.reshape(N, ksize * ksize * C, Ho * Wo)   # row k = (dh*3+dw)*C + c
    return col, Ho, Wo


def _weight_matrix(weight_oihw, dtype=jnp.bfloat16):
    """(Cout, Cin, 3, 3) -> (Cout, 9*Cin), row order matching _tap_matrix."""
    Cout, Cin, kh, kw = weight_oihw.shape
    return (jnp.transpose(weight_oihw, (0, 2, 3, 1))
            .reshape(Cout, kh * kw * Cin).astype(dtype))


def _pick_spatial_tile(M, kx, kc, cx, cc):
    """Largest lane tile (multiple of 128 dividing M) whose double-buffered
    footprint stays well under the default scoped-VMEM limit (v7x-safe)."""
    budget = 20 * 1024 * 1024

    def fits(tm):
        col_bytes = 2 * tm * (kx + kc) * 2   # double-buffered bf16 input tiles
        out_bytes = 2 * tm * (cx + cc) * 4   # double-buffered f32 output tiles
        return col_bytes + out_bytes <= budget

    for tm in (2048, 1024, 512, 256, 128):
        if M % tm == 0 and fits(tm):
            return tm
    return M  # tiny feature maps: one full-width tile (still lane-dense vs Cout)


# ----------------------------------------------------------------------------
# Downsample module (forward only)
# ----------------------------------------------------------------------------
def downsample_forward(params, x, t, cond):
    _ = t  # unused, matching the PyTorch module
    N, Cx, H, W = x.shape
    Cc = cond.shape[1]

    colx, Ho, Wo = _tap_matrix(x)
    colc, _, _ = _tap_matrix(cond)
    M = Ho * Wo
    Kx, Kc = 9 * Cx, 9 * Cc

    wx = _weight_matrix(params["conv_x_w"])
    wc = _weight_matrix(params["conv_cond_w"])
    bx = params["conv_x_b"].reshape(Cx, 1).astype(jnp.float32)
    bc = params["conv_cond_b"].reshape(Cc, 1).astype(jnp.float32)

    TM = _pick_spatial_tile(M, Kx, Kc, Cx, Cc)
    grid = (N, M // TM)

    ox, oc = pl.pallas_call(
        _dual_conv_kernel,
        out_shape=(
            jax.ShapeDtypeStruct((N, Cx, M), jnp.float32),
            jax.ShapeDtypeStruct((N, Cc, M), jnp.float32),
        ),
        grid=grid,
        in_specs=[
            pl.BlockSpec((1, Kx, TM), lambda n, j: (n, 0, j)),
            pl.BlockSpec((Cx, Kx), lambda n, j: (0, 0)),
            pl.BlockSpec((Cx, 1), lambda n, j: (0, 0)),
            pl.BlockSpec((1, Kc, TM), lambda n, j: (n, 0, j)),
            pl.BlockSpec((Cc, Kc), lambda n, j: (0, 0)),
            pl.BlockSpec((Cc, 1), lambda n, j: (0, 0)),
        ],
        out_specs=(
            pl.BlockSpec((1, Cx, TM), lambda n, j: (n, 0, j)),
            pl.BlockSpec((1, Cc, TM), lambda n, j: (n, 0, j)),
        ),
        compiler_params=pltpu.CompilerParams(
            dimension_semantics=("parallel", "parallel"),
        ),
    )(colx, wx, bx, colc, wc, bc)

    # (N, Cout, Ho*Wo) is already flat NCHW -> plain reshape, no transpose.
    return ox.reshape(N, Cx, Ho, Wo), oc.reshape(N, Cc, Ho, Wo)


def init_params(key, n_channels, orig_channels):
    k1, k2, k3, k4 = jax.random.split(key, 4)
    # deterministic synthetic init (shapes match nn.Conv2d weights/biases)
    return {
        "conv_x_w": jax.random.normal(k1, (n_channels, n_channels, 3, 3), jnp.float32) * 0.1,
        "conv_x_b": jax.random.normal(k2, (n_channels,), jnp.float32) * 0.1,
        "conv_cond_w": jax.random.normal(k3, (orig_channels, orig_channels, 3, 3), jnp.float32) * 0.1,
        "conv_cond_b": jax.random.normal(k4, (orig_channels,), jnp.float32) * 0.1,
    }


def _conv_reference(x, w, b):
    out = jax.lax.conv_general_dilated(
        x, w, window_strides=(2, 2), padding=((1, 1), (1, 1)),
        dimension_numbers=("NCHW", "OIHW", "NCHW"),
    )
    return out + b[None, :, None, None]


if __name__ == "__main__":
    n_channels = 4
    orig_channels = 3
    batch, spatial = 2, 16

    key = jax.random.PRNGKey(0)
    kx, kt, kc, kp = jax.random.split(key, 4)
    x = jax.random.normal(kx, (batch, n_channels, spatial, spatial), jnp.float32)
    t = jax.random.normal(kt, (batch, 32), jnp.float32)  # unused by forward
    cond = jax.random.normal(kc, (batch, orig_channels, spatial, spatial), jnp.float32)

    params = init_params(kp, n_channels, orig_channels)

    x_out, cond_out = jax.jit(downsample_forward)(params, x, t, cond)
    jax.block_until_ready((x_out, cond_out))

    assert x_out.shape == (batch, n_channels, spatial // 2, spatial // 2)
    assert cond_out.shape == (batch, orig_channels, spatial // 2, spatial // 2)

    # correctness check vs f32 XLA conv reference (loose tolerance: kernel uses
    # bf16 operands with f32 accumulation).
    x_ref = _conv_reference(x, params["conv_x_w"], params["conv_x_b"])
    c_ref = _conv_reference(cond, params["conv_cond_w"], params["conv_cond_b"])
    assert jnp.allclose(x_out, x_ref, atol=3e-2, rtol=3e-2)
    assert jnp.allclose(cond_out, c_ref, atol=3e-2, rtol=3e-2)

    print("KERNEL_OK")
</pallas_src>

<mosaic_0001>
module attributes {stable_mosaic.version = 11 : i64} {
  func.func @_dual_conv_kernel(%arg0: i32, %arg1: i32, %arg2: memref<1x36x64xbf16, #tpu.memory_space<vmem>>, %arg3: memref<4x36xbf16, #tpu.memory_space<vmem>>, %arg4: memref<4x1xf32, #tpu.memory_space<vmem>>, %arg5: memref<1x27x64xbf16, #tpu.memory_space<vmem>>, %arg6: memref<3x27xbf16, #tpu.memory_space<vmem>>, %arg7: memref<3x1xf32, #tpu.memory_space<vmem>>, %arg8: memref<1x4x64xf32, #tpu.memory_space<vmem>>, %arg9: memref<1x3x64xf32, #tpu.memory_space<vmem>>) attributes {dimension_semantics = [#tpu.dimension_semantics<parallel>, #tpu.dimension_semantics<parallel>], iteration_bounds = array<i64: 2, 1>, scalar_prefetch = 0 : i64, scratch_operands = 0 : i64, tpu.core_type = #tpu.core_type<tc>, window_params = [{transform_indices = @transform_0, window_bounds = array<i64: 1, 36, 64>}, {pipeline_mode = #tpu.pipeline_mode<synchronous>, transform_indices = @transform_1, window_bounds = array<i64: 4, 36>}, {pipeline_mode = #tpu.pipeline_mode<synchronous>, transform_indices = @transform_2, window_bounds = array<i64: 4, 1>}, {transform_indices = @transform_3, window_bounds = array<i64: 1, 27, 64>}, {pipeline_mode = #tpu.pipeline_mode<synchronous>, transform_indices = @transform_4, window_bounds = array<i64: 3, 27>}, {pipeline_mode = #tpu.pipeline_mode<synchronous>, transform_indices = @transform_5, window_bounds = array<i64: 3, 1>}, {transform_indices = @transform_6, window_bounds = array<i64: 1, 4, 64>}, {transform_indices = @transform_7, window_bounds = array<i64: 1, 3, 64>}]} {
    %c0 = arith.constant 0 : index
    %c0_0 = arith.constant 0 : index
    %0 = vector.load %arg3[%c0, %c0_0] : memref<4x36xbf16, #tpu.memory_space<vmem>>, vector<4x36xbf16>
    %c0_1 = arith.constant 0 : index
    %c0_2 = arith.constant 0 : index
    %c0_3 = arith.constant 0 : index
    %1 = vector.load %arg2[%c0_1, %c0_2, %c0_3] : memref<1x36x64xbf16, #tpu.memory_space<vmem>>, vector<1x36x64xbf16>
    %2 = vector.shape_cast %1 : vector<1x36x64xbf16> to vector<36x64xbf16>
    %cst = arith.constant dense<0.000000e+00> : vector<4x64xf32>
    %3 = tpu.matmul %0, %2, %cst {dimension_numbers = #tpu.dot_dimension_numbers<[1], [0], [0], [1], [0, 0, 1, 1], [], []>} : vector<4x36xbf16>, vector<36x64xbf16>, vector<4x64xf32> -> vector<4x64xf32>
    %c0_4 = arith.constant 0 : index
    %c0_5 = arith.constant 0 : index
    %4 = vector.load %arg4[%c0_4, %c0_5] : memref<4x1xf32, #tpu.memory_space<vmem>>, vector<4x1xf32>
    %5 = vector.broadcast %4 : vector<4x1xf32> to vector<4x64xf32>
    %6 = arith.addf %3, %5 : vector<4x64xf32>
    %c0_6 = arith.constant 0 : index
    %c0_7 = arith.constant 0 : index
    %c0_8 = arith.constant 0 : index
    %7 = vector.load %arg8[%c0_6, %c0_7, %c0_8] : memref<1x4x64xf32, #tpu.memory_space<vmem>>, vector<1x4x64xf32>
    %8 = vector.shape_cast %7 : vector<1x4x64xf32> to vector<4x64xf32>
    %9 = vector.shape_cast %6 : vector<4x64xf32> to vector<1x4x64xf32>
    tpu.vector_store %arg8[%c0_6, %c0_7, %c0_8], %9 {strides = array<i32>} : memref<1x4x64xf32, #tpu.memory_space<vmem>>, vector<1x4x64xf32>,
    %c0_9 = arith.constant 0 : index
    %c0_10 = arith.constant 0 : index
    %10 = vector.load %arg6[%c0_9, %c0_10] : memref<3x27xbf16, #tpu.memory_space<vmem>>, vector<3x27xbf16>
    %c0_11 = arith.constant 0 : index
    %c0_12 = arith.constant 0 : index
    %c0_13 = arith.constant 0 : index
    %11 = vector.load %arg5[%c0_11, %c0_12, %c0_13] : memref<1x27x64xbf16, #tpu.memory_space<vmem>>, vector<1x27x64xbf16>
    %12 = vector.shape_cast %11 : vector<1x27x64xbf16> to vector<27x64xbf16>
    %cst_14 = arith.constant dense<0.000000e+00> : vector<3x64xf32>
    %13 = tpu.matmul %10, %12, %cst_14 {dimension_numbers = #tpu.dot_dimension_numbers<[1], [0], [0], [1], [0, 0, 1, 1], [], []>} : vector<3x27xbf16>, vector<27x64xbf16>, vector<3x64xf32> -> vector<3x64xf32>
    %c0_15 = arith.constant 0 : index
    %c0_16 = arith.constant 0 : index
    %14 = vector.load %arg7[%c0_15, %c0_16] : memref<3x1xf32, #tpu.memory_space<vmem>>, vector<3x1xf32>
    %15 = vector.broadcast %14 : vector<3x1xf32> to vector<3x64xf32>
    %16 = arith.addf %13, %15 : vector<3x64xf32>
    %c0_17 = arith.constant 0 : index
    %c0_18 = arith.constant 0 : index
    %c0_19 = arith.constant 0 : index
    %17 = vector.load %arg9[%c0_17, %c0_18, %c0_19] : memref<1x3x64xf32, #tpu.memory_space<vmem>>, vector<1x3x64xf32>
    %18 = vector.shape_cast %17 : vector<1x3x64xf32> to vector<3x64xf32>
    %19 = vector.shape_cast %16 : vector<3x64xf32> to vector<1x3x64xf32>
    tpu.vector_store %arg9[%c0_17, %c0_18, %c0_19], %19 {strides = array<i32>} : memref<1x3x64xf32, #tpu.memory_space<vmem>>, vector<1x3x64xf32>,
    return
  }
  func.func @transform_0(%arg0: i32, %arg1: i32) -> (i32, i32, i32) {
    %c0_i32 = arith.constant 0 : i32
    %c0_i32_0 = arith.constant 0 : i32
    return %arg0, %c0_i32, %arg1 : i32, i32, i32
  }
  func.func @transform_1(%arg0: i32, %arg1: i32) -> (i32, i32) {
    %c0_i32 = arith.constant 0 : i32
    %c0_i32_0 = arith.constant 0 : i32
    %c0_i32_1 = arith.constant 0 : i32
    return %c0_i32, %c0_i32_0 : i32, i32
  }
  func.func @transform_2(%arg0: i32, %arg1: i32) -> (i32, i32) {
    %c0_i32 = arith.constant 0 : i32
    %c0_i32_0 = arith.constant 0 : i32
    %c0_i32_1 = arith.constant 0 : i32
    return %c0_i32, %c0_i32_0 : i32, i32
  }
  func.func @transform_3(%arg0: i32, %arg1: i32) -> (i32, i32, i32) {
    %c0_i32 = arith.constant 0 : i32
    %c0_i32_0 = arith.constant 0 : i32
    return %arg0, %c0_i32, %arg1 : i32, i32, i32
  }
  func.func @transform_4(%arg0: i32, %arg1: i32) -> (i32, i32) {
    %c0_i32 = arith.constant 0 : i32
    %c0_i32_0 = arith.constant 0 : i32
    %c0_i32_1 = arith.constant 0 : i32
    return %c0_i32, %c0_i32_0 : i32, i32
  }
  func.func @transform_5(%arg0: i32, %arg1: i32) -> (i32, i32) {
    %c0_i32 = arith.constant 0 : i32
    %c0_i32_0 = arith.constant 0 : i32
    %c0_i32_1 = arith.constant 0 : i32
    return %c0_i32, %c0_i32_0 : i32, i32
  }
  func.func @transform_6(%arg0: i32, %arg1: i32) -> (i32, i32, i32) {
    %c0_i32 = arith.constant 0 : i32
    %c0_i32_0 = arith.constant 0 : i32
    return %arg0, %c0_i32, %arg1 : i32, i32, i32
  }
  func.func @transform_7(%arg0: i32, %arg1: i32) -> (i32, i32, i32) {
    %c0_i32 = arith.constant 0 : i32
    %c0_i32_0 = arith.constant 0 : i32
    return %arg0, %c0_i32, %arg1 : i32, i32, i32
  }
}

</mosaic_0001>

<llo_original>
// kernel: downsample_forward.1
$region0: #{downsample_forward.1}
  #allocation0 [shape = 'u32[]', space=smem, size = 0x4, offset = 0x4, fixed_abs, tag = 'smem constant byte address 0x4 - core index']
  #allocation1 [shape = 'u32[144,128]{1,0:T(1,128)}', space=vmem, size = 0x12000, scoped, tag = 'internal scratch']
  %s0 = inlined_call_operand.vmem [shape: bf16[2,36,64], index: 0, kind: input, shape index: {}]
  %s1 = inlined_call_operand.vmem [shape: bf16[4,36], index: 1, kind: input, shape index: {}]
  %s2 = inlined_call_operand.vmem [shape: f32[4,1], index: 2, kind: input, shape index: {}]
  %s3 = inlined_call_operand.vmem [shape: bf16[2,27,64], index: 3, kind: input, shape index: {}]
  %s4 = inlined_call_operand.vmem [shape: bf16[3,27], index: 4, kind: input, shape index: {}]
  %s5 = inlined_call_operand.vmem [shape: f32[3,1], index: 5, kind: input, shape index: {}]
  %s6 = inlined_call_operand.vmem [shape: f32[2,4,64], index: 6, kind: output, shape index: {0}]
  %s7 = inlined_call_operand.vmem [shape: f32[2,3,64], index: 7, kind: output, shape index: {1}]
  %8 = xla_tuple %s6, %s7
  %s9 = sld [smem:[#allocation0]]
  $region65: #{downsample_forward.1} parent=0
    _
  %s11 = ssub.s32 1, %s9
  %s12 = scalar_select 0, %s11, %s9
  loop: start=0, step=1, limit=4
  $region2: #{downsample_forward.1} parent=0 // loop_pre_header
    _
  $region3: #{downsample_forward.1} parent=0 // loop_header
    %s14 = sphi 0, %s18
    %p15 = scmp.ge.s32.totalorder %s14, 4
    %s21 = sphi 0, %s33
    %s22 = sphi 0, %s29
    %s23 = sphi 0, %s21
    %s24 = sphi 0, %s22
    %s25 = sphi 0, %s23
    %s26 = sphi 0, %s24
    %s38 = sphi 0, %s40
    %s41 = sphi 0, %s38
    %s42 = sphi 0, %s41
    %s58 = sphi 0, %s42
    %s62 = sphi 0, %s62
    %s64 = sphi 0, %s62
    %s65 = sphi 0, %s64
    %s79 = sphi 0, %s65
    %s83 = sphi 0, %s83
    %s85 = sphi 0, %s83
    %s86 = sphi 0, %s85
    %s100 = sphi 0, %s86
    %s108 = sphi 0, %s110
    %s111 = sphi 0, %s108
    %s112 = sphi 0, %s111
    %s128 = sphi 0, %s112
    %s132 = sphi 0, %s132
    %s134 = sphi 0, %s132
    %s135 = sphi 0, %s134
    %s149 = sphi 0, %s135
    %s153 = sphi 0, %s153
    %s155 = sphi 0, %s153
    %s156 = sphi 0, %s155
    %s170 = sphi 0, %s156
    %s178 = sphi 0, %s180
    %s181 = sphi 0, %s178
    %s182 = sphi 0, %s181
    %s198 = sphi 0, %s182
    %s206 = sphi 0, %s208
    %s209 = sphi 0, %s206
    %s210 = sphi 0, %s209
    %s226 = sphi 0, %s210
  $region4: #{downsample_forward.1} parent=0 // loop_header_branch
    %17 = sbr.rel (%p15) target = $region8
  $region5: #{downsample_forward.1} parent=0 // loop_body
    %s19 = ssub.s32 %s14, 1
    %s20 = ssub.s32 %s14, 2
    %s27 = sadd.s32 1, %s22
    %p28 = scmp.ge.s32.totalorder %s27, 1
    %s29 = scalar_select %p28, 0, %s27
    %s30 = sadd.s32 1, %s21
    %s31 = scalar_select %p28, %s30, %s21
    %p32 = scmp.ge.s32.totalorder %s31, 2
    %s33 = scalar_select %p32, 0, %s31
    %s34 = ssub.s32 %s21, %s33
    %s35 = ssub.s32 %s22, %s29
    %s36 = sor.u32 %s34, %s35
    %p37 = scmp.eq.s32.totalorder %s36, 0
    %s39 = sadd.s32 %s38, 1
    %s40 = scalar_select %p37, %s38, %s39
    %p43 = pneg %p37
    %p44 = scmp.eq.s32.totalorder %s14, 1
    %p45 = por %p43, %p44
    %p46 = scmp.ne.s32.totalorder %s38, %s41
    %p47 = scmp.eq.s32.totalorder %s14, 0
    %p48 = por %p46, %p47
    %p49 = scmp.ne.s32.totalorder %s38, %s41
    %p50 = scmp.eq.s32.totalorder %s19, 1
    %p51 = por %p49, %p50
    %p52 = scmp.ne.s32.totalorder %s41, %s42
    %p53 = scmp.eq.s32.totalorder %s19, 0
    %p54 = por %p52, %p53
    %p55 = scmp.ne.s32.totalorder %s41, %s42
    %p56 = scmp.eq.s32.totalorder %s20, 1
    %p57 = por %p55, %p56
    %p59 = scmp.ne.s32.totalorder %s42, %s58
    %p60 = scmp.eq.s32.totalorder %s20, 0
    %p61 = por %p59, %p60
    %s63 = sadd.s32 %s62, 1
    %p66 = scmp.eq.s32.totalorder %s14, 1
    %p67 = scmp.ne.s32.totalorder %s62, %s64
    %p68 = scmp.eq.s32.totalorder %s14, 0
    %p69 = por %p67, %p68
    %p70 = scmp.ne.s32.totalorder %s62, %s64
    %p71 = scmp.eq.s32.totalorder %s19, 1
    %p72 = por %p70, %p71
    %p73 = scmp.ne.s32.totalorder %s64, %s65
    %p74 = scmp.eq.s32.totalorder %s19, 0
    %p75 = por %p73, %p74
    %p76 = scmp.ne.s32.totalorder %s64, %s65
    %p77 = scmp.eq.s32.totalorder %s20, 1
    %p78 = por %p76, %p77
    %p80 = scmp.ne.s32.totalorder %s65, %s79
    %p81 = scmp.eq.s32.totalorder %s20, 0
    %p82 = por %p80, %p81
    %s84 = sadd.s32 %s83, 1
    %p87 = scmp.eq.s32.totalorder %s14, 1
    %p88 = scmp.ne.s32.totalorder %s83, %s85
    %p89 = scmp.eq.s32.totalorder %s14, 0
    %p90 = por %p88, %p89
    %p91 = scmp.ne.s32.totalorder %s83, %s85
    %p92 = scmp.eq.s32.totalorder %s19, 1
    %p93 = por %p91, %p92
    %p94 = scmp.ne.s32.totalorder %s85, %s86
    %p95 = scmp.eq.s32.totalorder %s19, 0
    %p96 = por %p94, %p95
    %p97 = scmp.ne.s32.totalorder %s85, %s86
    %p98 = scmp.eq.s32.totalorder %s20, 1
    %p99 = por %p97, %p98
    %p101 = scmp.ne.s32.totalorder %s86, %s100
    %p102 = scmp.eq.s32.totalorder %s20, 0
    %p103 = por %p101, %p102
    %s104 = ssub.s32 %s21, %s33
    %s105 = ssub.s32 %s22, %s29
    %s106 = sor.u32 %s104, %s105
    %p107 = scmp.eq.s32.totalorder %s106, 0
    %s109 = sadd.s32 %s108, 1
    %s110 = scalar_select %p107, %s108, %s109
    %p113 = pneg %p107
    %p114 = scmp.eq.s32.totalorder %s14, 1
    %p115 = por %p113, %p114
    %p116 = scmp.ne.s32.totalorder %s108, %s111
    %p117 = scmp.eq.s32.totalorder %s14, 0
    %p118 = por %p116, %p117
    %p119 = scmp.ne.s32.totalorder %s108, %s111
    %p120 = scmp.eq.s32.totalorder %s19, 1
    %p121 = por %p119, %p120
    %p122 = scmp.ne.s32.totalorder %s111, %s112
    %p123 = scmp.eq.s32.totalorder %s19, 0
    %p124 = por %p122, %p123
    %p125 = scmp.ne.s32.totalorder %s111, %s112
    %p126 = scmp.eq.s32.totalorder %s20, 1
    %p127 = por %p125, %p126
    %p129 = scmp.ne.s32.totalorder %s112, %s128
    %p130 = scmp.eq.s32.totalorder %s20, 0
    %p131 = por %p129, %p130
    %s133 = sadd.s32 %s132, 1
    %p136 = scmp.eq.s32.totalorder %s14, 1
    %p137 = scmp.ne.s32.totalorder %s132, %s134
    %p138 = scmp.eq.s32.totalorder %s14, 0
    %p139 = por %p137, %p138
    %p140 = scmp.ne.s32.totalorder %s132, %s134
    %p141 = scmp.eq.s32.totalorder %s19, 1
    %p142 = por %p140, %p141
    %p143 = scmp.ne.s32.totalorder %s134, %s135
    %p144 = scmp.eq.s32.totalorder %s19, 0
    %p145 = por %p143, %p144
    %p146 = scmp.ne.s32.totalorder %s134, %s135
    %p147 = scmp.eq.s32.totalorder %s20, 1
    %p148 = por %p146, %p147
    %p150 = scmp.ne.s32.totalorder %s135, %s149
    %p151 = scmp.eq.s32.totalorder %s20, 0
    %p152 = por %p150, %p151
    %s154 = sadd.s32 %s153, 1
    %p157 = scmp.eq.s32.totalorder %s14, 1
    %p158 = scmp.ne.s32.totalorder %s153, %s155
    %p159 = scmp.eq.s32.totalorder %s14, 0
    %p160 = por %p158, %p159
    %p161 = scmp.ne.s32.totalorder %s153, %s155
    %p162 = scmp.eq.s32.totalorder %s19, 1
    %p163 = por %p161, %p162
    %p164 = scmp.ne.s32.totalorder %s155, %s156
    %p165 = scmp.eq.s32.totalorder %s19, 0
    %p166 = por %p164, %p165
    %p167 = scmp.ne.s32.totalorder %s155, %s156
    %p168 = scmp.eq.s32.totalorder %s20, 1
    %p169 = por %p167, %p168
    %p171 = scmp.ne.s32.totalorder %s156, %s170
    %p172 = scmp.eq.s32.totalorder %s20, 0
    %p173 = por %p171, %p172
    %s174 = ssub.s32 %s21, %s33
    %s175 = ssub.s32 %s22, %s29
    %s176 = sor.u32 %s174, %s175
    %p177 = scmp.eq.s32.totalorder %s176, 0
    %s179 = sadd.s32 %s178, 1
    %s180 = scalar_select %p177, %s178, %s179
    %p183 = pneg %p177
    %p184 = scmp.eq.s32.totalorder %s14, 1
    %p185 = por %p183, %p184
    %p186 = scmp.ne.s32.totalorder %s178, %s181
    %p187 = scmp.eq.s32.totalorder %s14, 0
    %p188 = por %p186, %p187
    %p189 = scmp.ne.s32.totalorder %s178, %s181
    %p190 = scmp.eq.s32.totalorder %s19, 1
    %p191 = por %p189, %p190
    %p192 = scmp.ne.s32.totalorder %s181, %s182
    %p193 = scmp.eq.s32.totalorder %s19, 0
    %p194 = por %p192, %p193
    %p195 = scmp.ne.s32.totalorder %s181, %s182
    %p196 = scmp.eq.s32.totalorder %s20, 1
    %p197 = por %p195, %p196
    %p199 = scmp.ne.s32.totalorder %s182, %s198
    %p200 = scmp.eq.s32.totalorder %s20, 0
    %p201 = por %p199, %p200
    %s202 = ssub.s32 %s21, %s33
    %s203 = ssub.s32 %s22, %s29
    %s204 = sor.u32 %s202, %s203
    %p205 = scmp.eq.s32.totalorder %s204, 0
    %s207 = sadd.s32 %s206, 1
    %s208 = scalar_select %p205, %s206, %s207
    %p211 = pneg %p205
    %p212 = scmp.eq.s32.totalorder %s14, 1
    %p213 = por %p211, %p212
    %p214 = scmp.ne.s32.totalorder %s206, %s209
    %p215 = scmp.eq.s32.totalorder %s14, 0
    %p216 = por %p214, %p215
    %p217 = scmp.ne.s32.totalorder %s206, %s209
    %p218 = scmp.eq.s32.totalorder %s19, 1
    %p219 = por %p217, %p218
    %p220 = scmp.ne.s32.totalorder %s209, %s210
    %p221 = scmp.eq.s32.totalorder %s19, 0
    %p222 = por %p220, %p221
    %p223 = scmp.ne.s32.totalorder %s209, %s210
    %p224 = scmp.eq.s32.totalorder %s20, 1
    %p225 = por %p223, %p224
    %p227 = scmp.ne.s32.totalorder %s210, %s226
    %p228 = scmp.eq.s32.totalorder %s20, 0
    %p229 = por %p227, %p228
    %p230 = scmp.le.s32.totalorder 1, %s14
    %p231 = scmp.lt.s32.totalorder %s14, 3
    %p232 = pnand %p230, %p231
    %p233 = pneg %p232
    // Predicated region
    $region9: #{downsample_forward.1} parent=5 // pred_check
      _
    $region10: #{downsample_forward.1} parent=5 // pred_check_branch
      %235 = sbr.rel (%p232) target = $region12
    $region11: #{downsample_forward.1} parent=5 // pred_region
      %s236 = ssub.s32 %s14, 1
      // Predicated region
      $region13: #{downsample_forward.1} parent=11 // pred_check
        %p237 = pneg %p75
      $region14: #{downsample_forward.1} parent=11 // pred_check_branch
        %239 = sbr.rel (%p237) target = $region16
      $region15: #{downsample_forward.1} parent=11 // pred_region
        _
      $region16: #{downsample_forward.1} parent=11 // pred_fallthru
        _
      // Predicated region
      $region17: #{downsample_forward.1} parent=11 // pred_check
        %p240 = pneg %p96
      $region18: #{downsample_forward.1} parent=11 // pred_check_branch
        %242 = sbr.rel (%p240) target = $region20
      $region19: #{downsample_forward.1} parent=11 // pred_region
        _
      $region20: #{downsample_forward.1} parent=11 // pred_fallthru
        _
      // Predicated region
      $region21: #{downsample_forward.1} parent=11 // pred_check
        %p243 = pneg %p145
      $region22: #{downsample_forward.1} parent=11 // pred_check_branch
        %245 = sbr.rel (%p243) target = $region24
      $region23: #{downsample_forward.1} parent=11 // pred_region
        _
      $region24: #{downsample_forward.1} parent=11 // pred_fallthru
        _
      // Predicated region
      $region25: #{downsample_forward.1} parent=11 // pred_check
        %p246 = pneg %p166
      $region26: #{downsample_forward.1} parent=11 // pred_check_branch
        %248 = sbr.rel (%p246) target = $region28
      $region27: #{downsample_forward.1} parent=11 // pred_region
        _
      $region28: #{downsample_forward.1} parent=11 // pred_fallthru
        _
    $region12: #{downsample_forward.1} parent=5 // pred_fallthru
      _
    %p249 = scmp.lt.s32.totalorder %s14, 2
    // Predicated region
    $region29: #{downsample_forward.1} parent=5 // pred_check
      %p250 = pneg %p249
    $region30: #{downsample_forward.1} parent=5 // pred_check_branch
      %252 = sbr.rel (%p250) target = $region32
    $region31: #{downsample_forward.1} parent=5 // pred_region
      // Predicated region
      $region33: #{downsample_forward.1} parent=31 // pred_check
        %p253 = pneg %p48
      $region34: #{downsample_forward.1} parent=31 // pred_check_branch
        %255 = sbr.rel (%p253) target = $region36
      $region35: #{downsample_forward.1} parent=31 // pred_region
        %p256 = scmp.lt.s32.totalorder %s21, 1
        %s257 = scalar_select %p256, %s21, 1
        %p258 = scmp.lt.s32.totalorder %s22, 0
        %s259 = scalar_select %p258, %s22, 0
        %s260 = smul.addr %s257, 5
        %s261 = sadd.s32 %s259, %s260
        %s262 = smul.addr %s261, 4
        %s263 = scalar_lea.vmem %s0, %s262
      $region36: #{downsample_forward.1} parent=31 // pred_fallthru
        _
      // Predicated region
      $region37: #{downsample_forward.1} parent=31 // pred_check
        %p264 = pneg %p118
      $region38: #{downsample_forward.1} parent=31 // pred_check_branch
        %266 = sbr.rel (%p264) target = $region40
      $region39: #{downsample_forward.1} parent=31 // pred_region
        %p267 = scmp.lt.s32.totalorder %s21, 1
        %s268 = scalar_select %p267, %s21, 1
        %p269 = scmp.lt.s32.totalorder %s22, 0
        %s270 = scalar_select %p269, %s22, 0
        %s271 = smul.addr %s268, 4
        %s272 = sadd.s32 %s270, %s271
        %s273 = smul.addr %s272, 4
        %s274 = scalar_lea.vmem %s3, %s273
      $region40: #{downsample_forward.1} parent=31 // pred_fallthru
        _
    $region32: #{downsample_forward.1} parent=5 // pred_fallthru
      _
    %p275 = scmp.le.s32.totalorder 1, %s14
    %p276 = scmp.lt.s32.totalorder %s14, 3
    %p277 = pnand %p275, %p276
    %p278 = pneg %p277
    // Predicated region
    $region41: #{downsample_forward.1} parent=5 // pred_check
      _
    $region42: #{downsample_forward.1} parent=5 // pred_check_branch
      %280 = sbr.rel (%p277) target = $region44
    $region43: #{downsample_forward.1} parent=5 // pred_region
      %s281 = ssub.s32 %s14, 1
      %p282 = scmp.lt.s32.totalorder %s23, 1
      %s283 = scalar_select %p282, %s23, 1
      %p284 = scmp.lt.s32.totalorder %s24, 0
      %s285 = scalar_select %p284, %s24, 0
      %s286 = smul.addr %s283, 5
      %s287 = sadd.s32 %s285, %s286
      %s288 = smul.addr %s287, 4
      %s289 = scalar_lea.vmem %s0, %s288
      %p290 = pneg %p54
      %p291 = pneg %p51
      %p292 = pneg %p75
      %p293 = pneg %p72
      %p294 = pneg %p96
      %p295 = pneg %p93
      %p296 = scmp.lt.s32.totalorder %s23, 1
      %s297 = scalar_select %p296, %s23, 1
      %p298 = scmp.lt.s32.totalorder %s24, 0
      %s299 = scalar_select %p298, %s24, 0
      %s300 = smul.addr %s297, 4
      %s301 = sadd.s32 %s299, %s300
      %s302 = smul.addr %s301, 4
      %s303 = scalar_lea.vmem %s3, %s302
      %p304 = pneg %p124
      %p305 = pneg %p121
      %p306 = pneg %p145
      %p307 = pneg %p142
      %p308 = pneg %p166
      %p309 = pneg %p163
      %p310 = pneg %p194
      %p311 = pneg %p191
      %p312 = scmp.lt.s32.totalorder %s23, 1
      %s313 = scalar_select %p312, %s23, 1
      %p314 = scmp.lt.s32.totalorder %s24, 0
      %s315 = scalar_select %p314, %s24, 0
      %s316 = sadd.s32 %s315, %s313
      %s317 = smul.addr %s316, 4
      %s318 = scalar_lea.vmem %s6, %s317
      %p319 = pneg %p222
      %p320 = pneg %p219
      %p321 = scmp.lt.s32.totalorder %s23, 1
      %s322 = scalar_select %p321, %s23, 1
      %p323 = scmp.lt.s32.totalorder %s24, 0
      %s324 = scalar_select %p323, %s24, 0
      %s325 = sadd.s32 %s324, %s322
      %s326 = smul.addr %s325, 4
      %s327 = scalar_lea.vmem %s7, %s326
      %p328 = scmp.lt.s32.totalorder %s23, 1
      %s329 = scalar_select %p328, %s23, 1
      %p330 = scmp.lt.s32.totalorder %s24, 0
      %s331 = scalar_select %p330, %s24, 0
      %s332 = smul.addr %s329, 5
      %s333 = sadd.s32 %s331, %s332
      %s334 = smul.addr %s333, 4
      %s335 = scalar_lea.vmem %s0, %s334
      %p336 = scmp.lt.s32.totalorder %s23, 1
      %s337 = scalar_select %p336, %s23, 1
      %p338 = scmp.lt.s32.totalorder %s24, 0
      %s339 = scalar_select %p338, %s24, 0
      %s340 = smul.addr %s337, 4
      %s341 = sadd.s32 %s339, %s340
      %s342 = smul.addr %s341, 4
      %s343 = scalar_lea.vmem %s3, %s342
      %p344 = scmp.lt.s32.totalorder %s23, 1
      %s345 = scalar_select %p344, %s23, 1
      %p346 = scmp.lt.s32.totalorder %s24, 0
      %s347 = scalar_select %p346, %s24, 0
      %s348 = sadd.s32 %s347, %s345
      %s349 = smul.addr %s348, 4
      %s350 = scalar_lea.vmem %s6, %s349
      %p351 = scmp.lt.s32.totalorder %s23, 1
      %s352 = scalar_select %p351, %s23, 1
      %p353 = scmp.lt.s32.totalorder %s24, 0
      %s354 = scalar_select %p353, %s24, 0
      %s355 = sadd.s32 %s354, %s352
      %s356 = smul.addr %s355, 4
      %s357 = scalar_lea.vmem %s7, %s356
      %v359 = vld [vmem:[%s1] sm:$0x3]
      %v360 = vld [vmem:[%s335] sm:$0xf]
      %v361 = vld [vmem:[%s335 + $0x4] sm:$0xf]
      %v362 = vld [vmem:[%s335 + $0x8] sm:$0xf]
      %v363 = vld [vmem:[%s335 + $0xc] sm:$0xf]
      %v364 = vld [vmem:[%s335 + $0x10] sm:$0x3]
      %v365 = vld [vmem:[%s2] sm:$0xf]
      %367 = vset.pattern.permute.xlu0 0
      %368 = vperm.xlu0 %367, %v365
      %v369 = vpop.permute.xlu0 %368
      %v376 = vunpack.c.l.b16 %v360
      %v377 = vunpack.c.l.b16 %v361
      %v378 = vunpack.c.l.b16 %v362
      %v379 = vunpack.c.l.b16 %v363
      %v380 = vunpack.c.l.b16 %v364
      %v381 = vpack.c.b16 %v377, %v376
      %v382 = vpack.c.b16 %v379, %v378
      %v383 = vpack.c.b16 %v380, %v380
      %vm386 = vcmask 293888
      %v388 = vsel %vm386, %v359, 0
      %vm390 = vcmask 1041408
      %v392 = vsel %vm390, %v383, 0
      %394 = vmatprep.subr.bf16.mxu0 0
      %395 = vmatpush1.bf16.msra.mxu0 0
      %396 = vmatprep.subr.bf16.mxu0 0
      %397 = vmatpush1.bf16.msra.mxu0 0
      %398 = vmatprep.subr.bf16.mxu0 0
      %399 = vmatpush1.bf16.msra.mxu0 0
      %400 = vmatprep.subr.bf16.mxu0 0
      %401 = vmatpush1.bf16.msra.mxu0 0
      %402 = vmatprep.subr.bf16.mxu0 0
      %403 = vmatpush1.bf16.msra.mxu0 0
      %404 = vmatprep.subr.bf16.mxu0 0
      %405 = vmatpush1.bf16.msra.mxu0 %v392
      %406 = vmatprep.subr.bf16.mxu0 0
      %407 = vmatpush1.bf16.msra.mxu0 %v382
      %408 = vmatprep.subr.bf16.mxu0 0
      %409 = vmatpush1.bf16.msra.mxu0 %v381
      %410 = vmatprep.subr.bf16.mxu0 0
      %411 = vmatpush2.bf16.msra.mxu0 0
      %412 = vmatprep.subr.bf16.mxu0 0
      %413 = vmatpush2.bf16.msra.mxu0 0
      %414 = vmatprep.subr.bf16.mxu0 0
      %415 = vmatpush2.bf16.msra.mxu0 0
      %416 = vmatprep.subr.bf16.mxu0 0
      %417 = vmatpush2.bf16.msra.mxu0 0
      %418 = vmatprep.subr.bf16.mxu0 0
      %419 = vmatpush2.bf16.msra.mxu0 0
      %420 = vmatprep.subr.bf16.mxu0 0
      %421 = vmatpush2.bf16.msra.mxu0 0
      %422 = vmatprep.subr.bf16.mxu0 0
      %423 = vmatpush2.bf16.msra.mxu0 0
      %424 = vmatprep.subr.bf16.mxu0 0
      %425 = vmatpush2.bf16.msra.mxu0 0
      %426 = vmatprep.mubr.bf16.mxu0 0
      %427 = vmatmul.mubr.bf16.gmra.mxu0 %v388
      %v428 = vpop.f32.mrf.mxu0
      %v429 = vadd.f32 %v369, %v428
      %v430 = vpop.f32.mrf.mxu0
      %v431 = vpop.f32.mrf.mxu0
      %v432 = vpop.f32.mrf.mxu0
      %433 = vdwg.mxu0
      %vm434 = vcmask 519168
      %435 = vst.msk [vmem:[%s350] sm:$0xf] %vm434, %v429
      %v436 = vld [vmem:[%s4] sm:$0x3]
      %v437 = vld [vmem:[%s343] sm:$0xf]
      %v438 = vld [vmem:[%s343 + $0x4] sm:$0xf]
      %v439 = vld [vmem:[%s343 + $0x8] sm:$0xf]
      %v440 = vld [vmem:[%s343 + $0xc] sm:$0x3]
      %v441 = vld [vmem:[%s5] sm:$0x7]
      %443 = vset.pattern.permute.xlu0 0
      %444 = vperm.xlu0 %443, %v441
      %v445 = vpop.permute.xlu0 %444
      %v451 = vunpack.c.l.b16 %v437
      %v452 = vunpack.c.l.b16 %v438
      %v453 = vunpack.c.l.b16 %v439
      %v454 = vunpack.c.l.b16 %v440
      %v455 = vpack.c.b16 %v452, %v451
      %v456 = vpack.c.b16 %v454, %v453
      %vm458 = vcmask 220160
      %v460 = vsel %vm458, %v436, 0
      %vm462 = vcmask 1044480
      %vm463 = vcmask 1045504
      %v464 = vsel %vm462, 4294967295, 65535
      %v465 = vsel %vm463, %v464, 0
      %v467 = vand.u32 %v456, %v465
      %469 = vmatprep.subr.bf16.mxu0 0
      %470 = vmatpush1.bf16.msra.mxu0 0
      %471 = vmatprep.subr.bf16.mxu0 0
      %472 = vmatpush1.bf16.msra.mxu0 0
      %473 = vmatprep.subr.bf16.mxu0 0
      %474 = vmatpush1.bf16.msra.mxu0 0
      %475 = vmatprep.subr.bf16.mxu0 0
      %476 = vmatpush1.bf16.msra.mxu0 0
      %477 = vmatprep.subr.bf16.mxu0 0
      %478 = vmatpush1.bf16.msra.mxu0 0
      %479 = vmatprep.subr.bf16.mxu0 0
      %480 = vmatpush1.bf16.msra.mxu0 0
      %481 = vmatprep.subr.bf16.mxu0 0
      %482 = vmatpush1.bf16.msra.mxu0 %v467
      %483 = vmatprep.subr.bf16.mxu0 0
      %484 = vmatpush1.bf16.msra.mxu0 %v455
      %485 = vmatprep.subr.bf16.mxu0 0
      %486 = vmatpush2.bf16.msra.mxu0 0
      %487 = vmatprep.subr.bf16.mxu0 0
      %488 = vmatpush2.bf16.msra.mxu0 0
      %489 = vmatprep.subr.bf16.mxu0 0
      %490 = vmatpush2.bf16.msra.mxu0 0
      %491 = vmatprep.subr.bf16.mxu0 0
      %492 = vmatpush2.bf16.msra.mxu0 0
      %493 = vmatprep.subr.bf16.mxu0 0
      %494 = vmatpush2.bf16.msra.mxu0 0
      %495 = vmatprep.subr.bf16.mxu0 0
      %496 = vmatpush2.bf16.msra.mxu0 0
      %497 = vmatprep.subr.bf16.mxu0 0
      %498 = vmatpush2.bf16.msra.mxu0 0
      %499 = vmatprep.subr.bf16.mxu0 0
      %500 = vmatpush2.bf16.msra.mxu0 0
      %501 = vmatprep.mubr.bf16.mxu0 0
      %502 = vmatmul.mubr.bf16.gmra.mxu0 %v460
      %v503 = vpop.f32.mrf.mxu0
      %v504 = vadd.f32 %v445, %v503
      %v505 = vpop.f32.mrf.mxu0
      %v506 = vpop.f32.mrf.mxu0
      %v507 = vpop.f32.mrf.mxu0
      %508 = vdwg.mxu0
      %vm509 = vcmask 518144
      %510 = vst.msk [vmem:[%s357] sm:$0x7] %vm509, %v504
      %p511 = scmp.lt.s32.totalorder %s23, 1
      %s512 = scalar_select %p511, %s23, 1
      %p513 = scmp.lt.s32.totalorder %s24, 0
      %s514 = scalar_select %p513, %s24, 0
      %s515 = sadd.s32 %s514, %s512
      %s516 = smul.addr %s515, 4
      %s517 = scalar_lea.vmem %s6, %s516
      %p518 = scmp.lt.s32.totalorder %s23, 1
      %s519 = scalar_select %p518, %s23, 1
      %p520 = scmp.lt.s32.totalorder %s24, 0
      %s521 = scalar_select %p520, %s24, 0
      %s522 = sadd.s32 %s521, %s519
      %s523 = smul.addr %s522, 4
      %s524 = scalar_lea.vmem %s7, %s523
      // Predicated region
      $region45: #{downsample_forward.1} parent=43 // pred_check
        %p525 = pneg %p191
      $region46: #{downsample_forward.1} parent=43 // pred_check_branch
        %527 = sbr.rel (%p525) target = $region48
      $region47: #{downsample_forward.1} parent=43 // pred_region
        _
      $region48: #{downsample_forward.1} parent=43 // pred_fallthru
        _
      // Predicated region
      $region49: #{downsample_forward.1} parent=43 // pred_check
        %p528 = pneg %p219
      $region50: #{downsample_forward.1} parent=43 // pred_check_branch
        %530 = sbr.rel (%p528) target = $region52
      $region51: #{downsample_forward.1} parent=43 // pred_region
        _
      $region52: #{downsample_forward.1} parent=43 // pred_fallthru
        _
    $region44: #{downsample_forward.1} parent=5 // pred_fallthru
      _
    %p531 = scmp.le.s32.totalorder 2, %s14
    // Predicated region
    $region53: #{downsample_forward.1} parent=5 // pred_check
      %p532 = pneg %p531
    $region54: #{downsample_forward.1} parent=5 // pred_check_branch
      %534 = sbr.rel (%p532) target = $region56
    $region55: #{downsample_forward.1} parent=5 // pred_region
      %s535 = ssub.s32 %s14, 2
      // Predicated region
      $region57: #{downsample_forward.1} parent=55 // pred_check
        %p536 = pneg %p197
      $region58: #{downsample_forward.1} parent=55 // pred_check_branch
        %538 = sbr.rel (%p536) target = $region60
      $region59: #{downsample_forward.1} parent=55 // pred_region
        %p539 = scmp.lt.s32.totalorder %s25, 1
        %s540 = scalar_select %p539, %s25, 1
        %p541 = scmp.lt.s32.totalorder %s26, 0
        %s542 = scalar_select %p541, %s26, 0
        %s543 = sadd.s32 %s542, %s540
        %s544 = smul.addr %s543, 4
        %s545 = scalar_lea.vmem %s6, %s544
      $region60: #{downsample_forward.1} parent=55 // pred_fallthru
        _
      // Predicated region
      $region61: #{downsample_forward.1} parent=55 // pred_check
        %p546 = pneg %p225
      $region62: #{downsample_forward.1} parent=55 // pred_check_branch
        %548 = sbr.rel (%p546) target = $region64
      $region63: #{downsample_forward.1} parent=55 // pred_region
        %p549 = scmp.lt.s32.totalorder %s25, 1
        %s550 = scalar_select %p549, %s25, 1
        %p551 = scmp.lt.s32.totalorder %s26, 0
        %s552 = scalar_select %p551, %s26, 0
        %s553 = sadd.s32 %s552, %s550
        %s554 = smul.addr %s553, 4
        %s555 = scalar_lea.vmem %s7, %s554
      $region64: #{downsample_forward.1} parent=55 // pred_fallthru
        _
    $region56: #{downsample_forward.1} parent=5 // pred_fallthru
      _
  $region6: #{downsample_forward.1} parent=0 // loop_footer
    %s18 = sadd.s32 1, %s14
  $region7: #{downsample_forward.1} parent=0 // loop_footer_branch
    %13 = sbr.rel target = $region3
  $region8: #{downsample_forward.1} parent=0 // loop_exit
    _

</llo_original>
